<compile_context>
chip_gen: v7x
topology: tpu7x:2x2x1
jax: 0.10.0
libtpu: 0.0.40
codegen_flags: <defaults>
</compile_context>

<pallas_src>
import jax
import jax.numpy as jnp
from jax.experimental import pallas as pl
from jax.experimental.pallas import tpu as pltpu


def _attblock3_kernel(g_ref, x_ref, bias_ref, w_ref, w2_ref, b2_ref, o_ref):
    # Upcast once; all in-kernel math runs in f32 regardless of I/O dtype.
    gf = g_ref[0].astype(jnp.float32)                  # [Cin, T]
    xf = x_ref[0].astype(jnp.float32)                  # [Cin, T]

    # Single K=2*Cin MXU matmul: point_conv with BN scale folded into the
    # weight; (point bias + gap_conv + BN shift) folded into `bias`.
    m = jnp.concatenate([gf, xf], axis=0)              # [2*Cin, T]
    out = jnp.dot(w_ref[...], m, preferred_element_type=jnp.float32)
    out = jnp.maximum(out + bias_ref[0], 0.0)          # bn1 + relu1  [Cout, T]

    # conv2 (Cout -> 1) as VPU multiply + sublane (XLU) reduce; b2 in SMEM.
    att_logit = jnp.sum(out * w2_ref[...], axis=0, keepdims=True) + b2_ref[0, 0]
    att = jax.nn.sigmoid(att_logit)                    # [1, T]

    # g*att + x*(1-att) == x + att*(g - x)  (one fewer full-size VPU mul)
    o_ref[0] = (xf + att * (gf - xf)).astype(o_ref.dtype)


def _round_up(v, m):
    return -(-v // m) * m


def _vmem_caps():
    """Generation-aware VMEM scoped limit + pipelined working-set budget.
    Falls back to the v7x floor (64 MiB/core) so the result is safe on every
    generation even if the query is unavailable."""
    try:
        cap = int(pltpu.get_tpu_info().vmem_capacity_bytes)
    except Exception:  # pragma: no cover - conservative fallback
        cap = 64 * 1024 * 1024
    cap = max(cap, 32 * 1024 * 1024)
    limit = min(int(cap * 0.75), 96 * 1024 * 1024)   # 48 MiB on v7x, 96 on v5e/v6e
    budget = int(limit * 0.80)                       # headroom for compiler scratch
    return budget, limit


def _choose_tile_hw(hw, cin, cout, n_batch, io_bytes, budget_bytes,
                    max_tile=64 * 1024):
    """Largest 128-multiple spatial tile whose working set (double-buffered
    g/x/out pipeline buffers with sublane padding + in-kernel f32 temporaries
    including the [Cout, T] intermediates) fits in `budget_bytes`.  The grid
    uses pl.cdiv, so the tile does NOT need to divide hw."""
    if hw <= 128:
        return hw                                     # block == full array dim
    pad8 = lambda v: _round_up(v, 8)
    io_rows = (2 * 2 + 2) * pad8(cin)                 # g,x (2-deep) + out (2-deep)
    tmp_rows_f32 = (4 * pad8(cin)                     # upcast tiles + blend temps
                    + pad8(2 * cin)                   # concatenated activation
                    + 3 * pad8(cout)                  # dot out / relu / w2*out
                    + 8)                              # att row
    bytes_per_lane = io_rows * io_bytes + tmp_rows_f32 * 4
    cap = max(budget_bytes // bytes_per_lane, 128)
    cap = min((cap // 128) * 128, max_tile)
    if n_batch == 1:
        # keep >= 2 grid points along the spatial axis so both v7x
        # TensorCores get work when the batch axis cannot provide them.
        cap = min(cap, _round_up(_round_up(hw, 2) // 2, 128))
    return min(cap, hw)


def attblock3_forward(g_nchw, x_nchw, params, *, io_dtype=jnp.float32,
                      tile_hw=None):
    """g_nchw, x_nchw: [N, Cin, H, W] (PyTorch layout)."""
    N, Cin, H, W = g_nchw.shape
    HW = H * W
    Cout = params["wp"].shape[0]

    # Pure reshape -- channels on sublanes, HW on lanes; no transposes.
    g32 = g_nchw.reshape(N, Cin, HW)
    x32 = x_nchw.reshape(N, Cin, HW)

    # Eval-mode BatchNorm folded to scale/shift; scale folded into weights.
    bn_scale = params["bn_gamma"] / jnp.sqrt(params["bn_var"] + params["bn_eps"])
    bn_shift = params["bn_beta"] - params["bn_mean"] * bn_scale
    w_fold = (bn_scale[:, None] * params["wp"]).astype(jnp.float32)  # [Cout, 2*Cin]

    # GAP branch per sample (tiny matmul), folded with point bias + BN shift.
    g_mean = jnp.mean(g32, axis=2, dtype=jnp.float32)                # [N, Cin]
    x_mean = jnp.mean(x32, axis=2, dtype=jnp.float32)                # [N, Cin]
    means = jnp.concatenate([g_mean, x_mean], axis=1)                # [N, 2*Cin]
    gap = means @ params["wg"].T + params["bg"]                      # [N, Cout]
    bias = (bn_scale * (params["bp"] + gap) + bn_shift)[:, :, None]
    bias = bias.astype(jnp.float32)                                  # [N, Cout, 1]

    w2 = params["w2"][:, None].astype(jnp.float32)                   # [Cout, 1]
    b2 = params["b2"].reshape(1, 1).astype(jnp.float32)              # [1, 1] -> SMEM

    # Optional reduced-precision storage (upstream producers should emit this
    # dtype directly to realize the HBM-traffic win end to end).
    g = g32.astype(io_dtype)
    x = x32.astype(io_dtype)

    io_bytes = jnp.dtype(io_dtype).itemsize
    budget, vmem_limit = _vmem_caps()
    if tile_hw is None:
        tile_hw = _choose_tile_hw(HW, Cin, Cout, N, io_bytes, budget)
    n_hw = pl.cdiv(HW, tile_hw)

    spec_gx = pl.BlockSpec((1, Cin, tile_hw), lambda n, t: (n, 0, t))
    spec_bias = pl.BlockSpec((1, Cout, 1), lambda n, t: (n, 0, 0))
    spec_w = pl.BlockSpec((Cout, 2 * Cin), lambda n, t: (0, 0))
    spec_w2 = pl.BlockSpec((Cout, 1), lambda n, t: (0, 0))
    spec_b2 = pl.BlockSpec(memory_space=pltpu.MemorySpace.SMEM)

    out = pl.pallas_call(
        _attblock3_kernel,
        out_shape=jax.ShapeDtypeStruct((N, Cin, HW), io_dtype),
        grid=(N, n_hw),
        in_specs=[spec_gx, spec_gx, spec_bias, spec_w, spec_w2, spec_b2],
        out_specs=pl.BlockSpec((1, Cin, tile_hw), lambda n, t: (n, 0, t)),
        compiler_params=pltpu.CompilerParams(
            dimension_semantics=("parallel", "parallel"),
            vmem_limit_bytes=int(vmem_limit)),
    )(g, x, bias, w_fold, w2, b2)

    return out.reshape(N, Cin, H, W)


def init_params(key, in_ch, r=16):
    """Synthetic parameters matching AttBlock3.__init__ shapes (PyTorch-native)."""
    out_ch = max(in_ch // r, 32)
    c2 = 2 * in_ch
    ks = jax.random.split(key, 10)
    wp = 0.1 * jax.random.normal(ks[0], (out_ch, c2), jnp.float32)   # point_conv.weight
    bp = 0.1 * jax.random.normal(ks[1], (out_ch,), jnp.float32)      # point_conv.bias
    wg = 0.1 * jax.random.normal(ks[2], (out_ch, c2), jnp.float32)   # gap_conv.weight
    bg = 0.1 * jax.random.normal(ks[3], (out_ch,), jnp.float32)      # gap_conv.bias
    w2 = 0.1 * jax.random.normal(ks[4], (out_ch,), jnp.float32)      # conv2.weight
    b2 = 0.1 * jax.random.normal(ks[5], (), jnp.float32)             # conv2.bias
    bn_gamma = 1.0 + 0.1 * jax.random.normal(ks[6], (out_ch,), jnp.float32)
    bn_beta = 0.1 * jax.random.normal(ks[7], (out_ch,), jnp.float32)
    bn_mean = 0.1 * jax.random.normal(ks[8], (out_ch,), jnp.float32)
    bn_var = jax.random.uniform(ks[9], (out_ch,), jnp.float32, 0.5, 1.5)
    return dict(wp=wp, bp=bp, wg=wg, bg=bg, w2=w2, b2=b2,
                bn_gamma=bn_gamma, bn_beta=bn_beta, bn_mean=bn_mean,
                bn_var=bn_var, bn_eps=1e-5)


def attblock3_reference(g, x, p):
    """Pure-JAX reference on NCHW, mirroring the PyTorch forward (eval-mode BN)."""
    N, Cin, H, W = g.shape
    HW = H * W
    m = jnp.concatenate([g, x], axis=1).reshape(N, 2 * Cin, HW)       # [N, 2C, HW]
    point = jnp.einsum('oc,nch->noh', p["wp"], m) + p["bp"][None, :, None]
    gap = jnp.einsum('oc,nc->no', p["wg"], jnp.mean(m, axis=2)) + p["bg"]
    bn_scale = p["bn_gamma"] / jnp.sqrt(p["bn_var"] + p["bn_eps"])
    bn_shift = p["bn_beta"] - p["bn_mean"] * bn_scale
    out = (point + gap[:, :, None]) * bn_scale[None, :, None] + bn_shift[None, :, None]
    out = jnp.maximum(out, 0.0)
    att = jax.nn.sigmoid(jnp.einsum('o,noh->nh', p["w2"], out)[:, None, :] + p["b2"])
    gf = g.reshape(N, Cin, HW)
    xf = x.reshape(N, Cin, HW)
    o = gf * att + xf * (1.0 - att)
    return o.reshape(N, Cin, H, W)


if __name__ == "__main__":
    N, in_ch, H, W = 2, 4, 16, 16
    key = jax.random.PRNGKey(0)
    kg, kx, kp = jax.random.split(key, 3)
    g = jax.random.normal(kg, (N, in_ch, H, W), jnp.float32)
    x = jax.random.normal(kx, (N, in_ch, H, W), jnp.float32)
    params = init_params(kp, in_ch)
    ref = attblock3_reference(g, x, params)

    # 1) f32 path, auto-chosen tile.
    out = jax.block_until_ready(attblock3_forward(g, x, params))
    assert out.shape == (N, in_ch, H, W)
    err = float(jnp.max(jnp.abs(out - ref)))
    assert err < 5e-4, f"f32 mismatch vs reference: max abs err = {err}"

    # 2) Non-128-multiple spatial extent with a forced small tile:
    #    exercises the pl.cdiv grid + masked tail block (HW=144 -> 128 + 16).
    H2, W2 = 12, 12
    g2 = jax.random.normal(kg, (N, in_ch, H2, W2), jnp.float32)
    x2 = jax.random.normal(kx, (N, in_ch, H2, W2), jnp.float32)
    out2 = jax.block_until_ready(attblock3_forward(g2, x2, params, tile_hw=128))
    err2 = float(jnp.max(jnp.abs(out2 - attblock3_reference(g2, x2, params))))
    assert err2 < 5e-4, f"tail-tile mismatch vs reference: max abs err = {err2}"

    # 3) bf16 I/O path (halved HBM traffic); compare loosely vs f32 reference.
    out_bf = jax.block_until_ready(
        attblock3_forward(g, x, params, io_dtype=jnp.bfloat16))
    err_bf = float(jnp.max(jnp.abs(out_bf.astype(jnp.float32) - ref)))
    assert err_bf < 1.5e-1, f"bf16 mismatch vs reference: max abs err = {err_bf}"

    print("KERNEL_OK")
</pallas_src>

<mosaic_0001>
module attributes {stable_mosaic.version = 11 : i64} {
  func.func @_attblock3_kernel(%arg0: i32, %arg1: i32, %arg2: memref<1x4x256xf32, #tpu.memory_space<vmem>>, %arg3: memref<1x4x256xf32, #tpu.memory_space<vmem>>, %arg4: memref<1x32x1xf32, #tpu.memory_space<vmem>>, %arg5: memref<32x8xf32, #tpu.memory_space<vmem>>, %arg6: memref<32x1xf32, #tpu.memory_space<vmem>>, %arg7: memref<1x1xf32, #tpu.memory_space<smem>>, %arg8: memref<1x4x256xf32, #tpu.memory_space<vmem>>) attributes {dimension_semantics = [#tpu.dimension_semantics<parallel>, #tpu.dimension_semantics<parallel>], iteration_bounds = array<i64: 2, 1>, scalar_prefetch = 0 : i64, scratch_operands = 0 : i64, tpu.core_type = #tpu.core_type<tc>, window_params = [{transform_indices = @transform_0, window_bounds = array<i64: 1, 4, 256>}, {transform_indices = @transform_1, window_bounds = array<i64: 1, 4, 256>}, {transform_indices = @transform_2, window_bounds = array<i64: 1, 32, 1>}, {pipeline_mode = #tpu.pipeline_mode<synchronous>, transform_indices = @transform_3, window_bounds = array<i64: 32, 8>}, {pipeline_mode = #tpu.pipeline_mode<synchronous>, transform_indices = @transform_4, window_bounds = array<i64: 32, 1>}, {transform_indices = @transform_5, window_bounds = array<i64: 1, 1>}, {transform_indices = @transform_6, window_bounds = array<i64: 1, 4, 256>}]} {
    %c0 = arith.constant 0 : index
    %c0_0 = arith.constant 0 : index
    %c0_1 = arith.constant 0 : index
    %0 = vector.load %arg2[%c0, %c0_0, %c0_1] : memref<1x4x256xf32, #tpu.memory_space<vmem>>, vector<1x4x256xf32>
    %1 = vector.shape_cast %0 : vector<1x4x256xf32> to vector<4x256xf32>
    %c0_2 = arith.constant 0 : index
    %c0_3 = arith.constant 0 : index
    %c0_4 = arith.constant 0 : index
    %2 = vector.load %arg3[%c0_2, %c0_3, %c0_4] : memref<1x4x256xf32, #tpu.memory_space<vmem>>, vector<1x4x256xf32>
    %3 = vector.shape_cast %2 : vector<1x4x256xf32> to vector<4x256xf32>
    %4 = tpu.concatenate %1, %3 in 0 : vector<4x256xf32>, vector<4x256xf32> -> vector<8x256xf32>
    %c0_5 = arith.constant 0 : index
    %c0_6 = arith.constant 0 : index
    %5 = vector.load %arg5[%c0_5, %c0_6] : memref<32x8xf32, #tpu.memory_space<vmem>>, vector<32x8xf32>
    %cst = arith.constant dense<0.000000e+00> : vector<32x256xf32>
    %6 = tpu.matmul %5, %4, %cst {dimension_numbers = #tpu.dot_dimension_numbers<[1], [0], [0], [1], [0, 0, 1, 1], [], []>} : vector<32x8xf32>, vector<8x256xf32>, vector<32x256xf32> -> vector<32x256xf32>
    %c0_7 = arith.constant 0 : index
    %c0_8 = arith.constant 0 : index
    %c0_9 = arith.constant 0 : index
    %7 = vector.load %arg4[%c0_7, %c0_8, %c0_9] : memref<1x32x1xf32, #tpu.memory_space<vmem>>, vector<1x32x1xf32>
    %8 = vector.shape_cast %7 : vector<1x32x1xf32> to vector<32x1xf32>
    %9 = vector.broadcast %8 : vector<32x1xf32> to vector<32x256xf32>
    %10 = arith.addf %6, %9 : vector<32x256xf32>
    %cst_10 = arith.constant 0.000000e+00 : f32
    %11 = vector.broadcast %cst_10 : f32 to vector<32x256xf32>
    %12 = arith.maximumf %10, %11 : vector<32x256xf32>
    %c0_11 = arith.constant 0 : index
    %c0_12 = arith.constant 0 : index
    %13 = vector.load %arg6[%c0_11, %c0_12] : memref<32x1xf32, #tpu.memory_space<vmem>>, vector<32x1xf32>
    %14 = vector.broadcast %13 : vector<32x1xf32> to vector<32x256xf32>
    %15 = arith.mulf %12, %14 : vector<32x256xf32>
    %cst_13 = arith.constant dense<0.000000e+00> : vector<256xf32>
    %16 = vector.multi_reduction <add>, %15, %cst_13 [0] : vector<32x256xf32> to vector<256xf32>
    %17 = vector.shape_cast %16 : vector<256xf32> to vector<1x256xf32>
    %c0_14 = arith.constant 0 : index
    %c0_15 = arith.constant 0 : index
    %18 = memref.load %arg7[%c0_14, %c0_15] : memref<1x1xf32, #tpu.memory_space<smem>>
    %19 = vector.broadcast %18 : f32 to vector<1x256xf32>
    %20 = arith.addf %17, %19 : vector<1x256xf32>
    %21 = arith.negf %20 : vector<1x256xf32>
    %22 = math.exp %21 : vector<1x256xf32>
    %cst_16 = arith.constant 1.000000e+00 : f32
    %23 = vector.broadcast %cst_16 : f32 to vector<1x256xf32>
    %24 = arith.addf %23, %22 : vector<1x256xf32>
    %25 = arith.divf %23, %24 : vector<1x256xf32>
    %26 = arith.subf %1, %3 : vector<4x256xf32>
    %27 = vector.broadcast %25 : vector<1x256xf32> to vector<4x256xf32>
    %28 = arith.mulf %27, %26 : vector<4x256xf32>
    %29 = arith.addf %3, %28 : vector<4x256xf32>
    %c0_17 = arith.constant 0 : index
    %c0_18 = arith.constant 0 : index
    %c0_19 = arith.constant 0 : index
    %30 = vector.load %arg8[%c0_17, %c0_18, %c0_19] : memref<1x4x256xf32, #tpu.memory_space<vmem>>, vector<1x4x256xf32>
    %31 = vector.shape_cast %30 : vector<1x4x256xf32> to vector<4x256xf32>
    %32 = vector.shape_cast %29 : vector<4x256xf32> to vector<1x4x256xf32>
    tpu.vector_store %arg8[%c0_17, %c0_18, %c0_19], %32 {strides = array<i32>} : memref<1x4x256xf32, #tpu.memory_space<vmem>>, vector<1x4x256xf32>,
    return
  }
  func.func @transform_0(%arg0: i32, %arg1: i32) -> (i32, i32, i32) {
    %c0_i32 = arith.constant 0 : i32
    %c0_i32_0 = arith.constant 0 : i32
    return %arg0, %c0_i32, %arg1 : i32, i32, i32
  }
  func.func @transform_1(%arg0: i32, %arg1: i32) -> (i32, i32, i32) {
    %c0_i32 = arith.constant 0 : i32
    %c0_i32_0 = arith.constant 0 : i32
    return %arg0, %c0_i32, %arg1 : i32, i32, i32
  }
  func.func @transform_2(%arg0: i32, %arg1: i32) -> (i32, i32, i32) {
    %c0_i32 = arith.constant 0 : i32
    %c0_i32_0 = arith.constant 0 : i32
    %c0_i32_1 = arith.constant 0 : i32
    return %arg0, %c0_i32, %c0_i32_0 : i32, i32, i32
  }
  func.func @transform_3(%arg0: i32, %arg1: i32) -> (i32, i32) {
    %c0_i32 = arith.constant 0 : i32
    %c0_i32_0 = arith.constant 0 : i32
    %c0_i32_1 = arith.constant 0 : i32
    return %c0_i32, %c0_i32_0 : i32, i32
  }
  func.func @transform_4(%arg0: i32, %arg1: i32) -> (i32, i32) {
    %c0_i32 = arith.constant 0 : i32
    %c0_i32_0 = arith.constant 0 : i32
    %c0_i32_1 = arith.constant 0 : i32
    return %c0_i32, %c0_i32_0 : i32, i32
  }
  func.func @transform_5(%arg0: i32, %arg1: i32) -> (i32, i32) {
    %c0_i32 = arith.constant 0 : i32
    %c0_i32_0 = arith.constant 0 : i32
    %c0_i32_1 = arith.constant 0 : i32
    return %c0_i32, %c0_i32_0 : i32, i32
  }
  func.func @transform_6(%arg0: i32, %arg1: i32) -> (i32, i32, i32) {
    %c0_i32 = arith.constant 0 : i32
    %c0_i32_0 = arith.constant 0 : i32
    return %arg0, %c0_i32, %arg1 : i32, i32, i32
  }
}

</mosaic_0001>

<llo_original>
// kernel: tpu_custom_call.1
$region0: #{tpu_custom_call.1}
  #allocation0 [shape = 'u32[]', space=smem, size = 0x4, offset = 0x4, fixed_abs, tag = 'smem constant byte address 0x4 - core index']
  #allocation1 [shape = 'u32[144,128]{1,0:T(1,128)}', space=vmem, size = 0x12000, scoped, tag = 'internal scratch']
  #allocation2 [shape = 'f32[1,1]{1,0:T(1,128)S(6)}', space=smem, size = 0x200, scoped, tag = 'scoped memory for tpu_custom_call.1']
  %s0 = inlined_call_operand.vmem [shape: f32[2,4,256], index: 0, kind: input, shape index: {}]
  %s1 = inlined_call_operand.vmem [shape: f32[2,4,256], index: 1, kind: input, shape index: {}]
  %s2 = inlined_call_operand.vmem [shape: f32[2,32,1], index: 2, kind: input, shape index: {}]
  %s3 = inlined_call_operand.vmem [shape: f32[32,8], index: 3, kind: input, shape index: {}]
  %s4 = inlined_call_operand.vmem [shape: f32[32,1], index: 4, kind: input, shape index: {}]
  %s5 = inlined_call_operand.<no memory space> [shape: f32[1,1], index: 5, kind: input, shape index: {}]
  %s6 = inlined_call_operand.hbm [shape: f32[2,4,256], index: 6, kind: output, shape index: {}]
  %s7 = sld [smem:[#allocation0]]
  $region57: #{tpu_custom_call.1} parent=0
    _
  %s9 = ssub.s32 1, %s7
  %s10 = scalar_select 0, %s9, %s7
  %11 = sst [smem:[#allocation2]] %s5
  $region1: #{tpu_custom_call.1} parent=0
    #allocation3 [shape = 'u8[8192]{0}', space=vmem, size = 0x2000, scoped, tag = 'output window, operand 0']
    #allocation4 [shape = 's32[2]{0}', space=sflag, size = 0x8, scoped, tag = 'scoped memory for tpu_custom_call.1']
    %12 = vsyncpa [#allocation4], 0
    %s13 = scalar_lea.sflag [#allocation4], 1
    %14 = vsyncpa %s13, 0
    loop: start=0, step=1, limit=4
    $region2: #{tpu_custom_call.1} parent=1 // loop_pre_header
      _
    $region3: #{tpu_custom_call.1} parent=1 // loop_header
      %s16 = sphi 0, %s20
      %p17 = scmp.ge.s32.totalorder %s16, 4
      %s23 = sphi 0, %s35
      %s24 = sphi 0, %s31
      %s25 = sphi 0, %s23
      %s26 = sphi 0, %s24
      %s27 = sphi 0, %s25
      %s28 = sphi 0, %s26
      %s40 = sphi 0, %s42
      %s43 = sphi 0, %s40
      %s44 = sphi 0, %s43
      %s60 = sphi 0, %s44
      %s68 = sphi 0, %s70
      %s71 = sphi 0, %s68
      %s72 = sphi 0, %s71
      %s88 = sphi 0, %s72
      %s94 = sphi 0, %s96
      %s97 = sphi 0, %s94
      %s98 = sphi 0, %s97
      %s114 = sphi 0, %s98
      %s118 = sphi 0, %s118
      %s120 = sphi 0, %s118
      %s121 = sphi 0, %s120
      %s135 = sphi 0, %s121
      %s139 = sphi 0, %s139
      %s141 = sphi 0, %s139
      %s142 = sphi 0, %s141
      %s156 = sphi 0, %s142
      %s160 = sphi 0, %s160
      %s162 = sphi 0, %s160
      %s163 = sphi 0, %s162
      %s177 = sphi 0, %s163
      %s185 = sphi 0, %s187
      %s188 = sphi 0, %s185
      %s189 = sphi 0, %s188
      %s205 = sphi 0, %s189
    $region4: #{tpu_custom_call.1} parent=1 // loop_header_branch
      %19 = sbr.rel (%p17) target = $region8
    $region5: #{tpu_custom_call.1} parent=1 // loop_body
      %s21 = ssub.s32 %s16, 1
      %s22 = ssub.s32 %s16, 2
      %s29 = sadd.s32 1, %s24
      %p30 = scmp.ge.s32.totalorder %s29, 1
      %s31 = scalar_select %p30, 0, %s29
      %s32 = sadd.s32 1, %s23
      %s33 = scalar_select %p30, %s32, %s23
      %p34 = scmp.ge.s32.totalorder %s33, 2
      %s35 = scalar_select %p34, 0, %s33
      %s36 = ssub.s32 %s23, %s35
      %s37 = ssub.s32 %s24, %s31
      %s38 = sor.u32 %s36, %s37
      %p39 = scmp.eq.s32.totalorder %s38, 0
      %s41 = sadd.s32 %s40, 1
      %s42 = scalar_select %p39, %s40, %s41
      %p45 = pneg %p39
      %p46 = scmp.eq.s32.totalorder %s16, 1
      %p47 = por %p45, %p46
      %p48 = scmp.ne.s32.totalorder %s40, %s43
      %p49 = scmp.eq.s32.totalorder %s16, 0
      %p50 = por %p48, %p49
      %p51 = scmp.ne.s32.totalorder %s40, %s43
      %p52 = scmp.eq.s32.totalorder %s21, 1
      %p53 = por %p51, %p52
      %p54 = scmp.ne.s32.totalorder %s43, %s44
      %p55 = scmp.eq.s32.totalorder %s21, 0
      %p56 = por %p54, %p55
      %p57 = scmp.ne.s32.totalorder %s43, %s44
      %p58 = scmp.eq.s32.totalorder %s22, 1
      %p59 = por %p57, %p58
      %p61 = scmp.ne.s32.totalorder %s44, %s60
      %p62 = scmp.eq.s32.totalorder %s22, 0
      %p63 = por %p61, %p62
      %s64 = ssub.s32 %s23, %s35
      %s65 = ssub.s32 %s24, %s31
      %s66 = sor.u32 %s64, %s65
      %p67 = scmp.eq.s32.totalorder %s66, 0
      %s69 = sadd.s32 %s68, 1
      %s70 = scalar_select %p67, %s68, %s69
      %p73 = pneg %p67
      %p74 = scmp.eq.s32.totalorder %s16, 1
      %p75 = por %p73, %p74
      %p76 = scmp.ne.s32.totalorder %s68, %s71
      %p77 = scmp.eq.s32.totalorder %s16, 0
      %p78 = por %p76, %p77
      %p79 = scmp.ne.s32.totalorder %s68, %s71
      %p80 = scmp.eq.s32.totalorder %s21, 1
      %p81 = por %p79, %p80
      %p82 = scmp.ne.s32.totalorder %s71, %s72
      %p83 = scmp.eq.s32.totalorder %s21, 0
      %p84 = por %p82, %p83
      %p85 = scmp.ne.s32.totalorder %s71, %s72
      %p86 = scmp.eq.s32.totalorder %s22, 1
      %p87 = por %p85, %p86
      %p89 = scmp.ne.s32.totalorder %s72, %s88
      %p90 = scmp.eq.s32.totalorder %s22, 0
      %p91 = por %p89, %p90
      %s92 = ssub.s32 %s23, %s35
      %p93 = scmp.eq.s32.totalorder %s92, 0
      %s95 = sadd.s32 %s94, 1
      %s96 = scalar_select %p93, %s94, %s95
      %p99 = pneg %p93
      %p100 = scmp.eq.s32.totalorder %s16, 1
      %p101 = por %p99, %p100
      %p102 = scmp.ne.s32.totalorder %s94, %s97
      %p103 = scmp.eq.s32.totalorder %s16, 0
      %p104 = por %p102, %p103
      %p105 = scmp.ne.s32.totalorder %s94, %s97
      %p106 = scmp.eq.s32.totalorder %s21, 1
      %p107 = por %p105, %p106
      %p108 = scmp.ne.s32.totalorder %s97, %s98
      %p109 = scmp.eq.s32.totalorder %s21, 0
      %p110 = por %p108, %p109
      %p111 = scmp.ne.s32.totalorder %s97, %s98
      %p112 = scmp.eq.s32.totalorder %s22, 1
      %p113 = por %p111, %p112
      %p115 = scmp.ne.s32.totalorder %s98, %s114
      %p116 = scmp.eq.s32.totalorder %s22, 0
      %p117 = por %p115, %p116
      %s119 = sadd.s32 %s118, 1
      %p122 = scmp.eq.s32.totalorder %s16, 1
      %p123 = scmp.ne.s32.totalorder %s118, %s120
      %p124 = scmp.eq.s32.totalorder %s16, 0
      %p125 = por %p123, %p124
      %p126 = scmp.ne.s32.totalorder %s118, %s120
      %p127 = scmp.eq.s32.totalorder %s21, 1
      %p128 = por %p126, %p127
      %p129 = scmp.ne.s32.totalorder %s120, %s121
      %p130 = scmp.eq.s32.totalorder %s21, 0
      %p131 = por %p129, %p130
      %p132 = scmp.ne.s32.totalorder %s120, %s121
      %p133 = scmp.eq.s32.totalorder %s22, 1
      %p134 = por %p132, %p133
      %p136 = scmp.ne.s32.totalorder %s121, %s135
      %p137 = scmp.eq.s32.totalorder %s22, 0
      %p138 = por %p136, %p137
      %s140 = sadd.s32 %s139, 1
      %p143 = scmp.eq.s32.totalorder %s16, 1
      %p144 = scmp.ne.s32.totalorder %s139, %s141
      %p145 = scmp.eq.s32.totalorder %s16, 0
      %p146 = por %p144, %p145
      %p147 = scmp.ne.s32.totalorder %s139, %s141
      %p148 = scmp.eq.s32.totalorder %s21, 1
      %p149 = por %p147, %p148
      %p150 = scmp.ne.s32.totalorder %s141, %s142
      %p151 = scmp.eq.s32.totalorder %s21, 0
      %p152 = por %p150, %p151
      %p153 = scmp.ne.s32.totalorder %s141, %s142
      %p154 = scmp.eq.s32.totalorder %s22, 1
      %p155 = por %p153, %p154
      %p157 = scmp.ne.s32.totalorder %s142, %s156
      %p158 = scmp.eq.s32.totalorder %s22, 0
      %p159 = por %p157, %p158
      %s161 = sadd.s32 %s160, 1
      %p164 = scmp.eq.s32.totalorder %s16, 1
      %p165 = scmp.ne.s32.totalorder %s160, %s162
      %p166 = scmp.eq.s32.totalorder %s16, 0
      %p167 = por %p165, %p166
      %p168 = scmp.ne.s32.totalorder %s160, %s162
      %p169 = scmp.eq.s32.totalorder %s21, 1
      %p170 = por %p168, %p169
      %p171 = scmp.ne.s32.totalorder %s162, %s163
      %p172 = scmp.eq.s32.totalorder %s21, 0
      %p173 = por %p171, %p172
      %p174 = scmp.ne.s32.totalorder %s162, %s163
      %p175 = scmp.eq.s32.totalorder %s22, 1
      %p176 = por %p174, %p175
      %p178 = scmp.ne.s32.totalorder %s163, %s177
      %p179 = scmp.eq.s32.totalorder %s22, 0
      %p180 = por %p178, %p179
      %s181 = ssub.s32 %s23, %s35
      %s182 = ssub.s32 %s24, %s31
      %s183 = sor.u32 %s181, %s182
      %p184 = scmp.eq.s32.totalorder %s183, 0
      %s186 = sadd.s32 %s185, 1
      %s187 = scalar_select %p184, %s185, %s186
      %p190 = pneg %p184
      %p191 = scmp.eq.s32.totalorder %s16, 1
      %p192 = por %p190, %p191
      %p193 = scmp.ne.s32.totalorder %s185, %s188
      %p194 = scmp.eq.s32.totalorder %s16, 0
      %p195 = por %p193, %p194
      %p196 = scmp.ne.s32.totalorder %s185, %s188
      %p197 = scmp.eq.s32.totalorder %s21, 1
      %p198 = por %p196, %p197
      %p199 = scmp.ne.s32.totalorder %s188, %s189
      %p200 = scmp.eq.s32.totalorder %s21, 0
      %p201 = por %p199, %p200
      %p202 = scmp.ne.s32.totalorder %s188, %s189
      %p203 = scmp.eq.s32.totalorder %s22, 1
      %p204 = por %p202, %p203
      %p206 = scmp.ne.s32.totalorder %s189, %s205
      %p207 = scmp.eq.s32.totalorder %s22, 0
      %p208 = por %p206, %p207
      %p209 = scmp.le.s32.totalorder 1, %s16
      %p210 = scmp.lt.s32.totalorder %s16, 3
      %p211 = pnand %p209, %p210
      %p212 = pneg %p211
      // Predicated region
      $region9: #{tpu_custom_call.1} parent=5 // pred_check
        _
      $region10: #{tpu_custom_call.1} parent=5 // pred_check_branch
        %214 = sbr.rel (%p211) target = $region12
      $region11: #{tpu_custom_call.1} parent=5 // pred_region
        %s215 = ssub.s32 %s16, 1
        // Predicated region
        $region13: #{tpu_custom_call.1} parent=11 // pred_check
          %p216 = pneg %p131
        $region14: #{tpu_custom_call.1} parent=11 // pred_check_branch
          %218 = sbr.rel (%p216) target = $region16
        $region15: #{tpu_custom_call.1} parent=11 // pred_region
          _
        $region16: #{tpu_custom_call.1} parent=11 // pred_fallthru
          _
        // Predicated region
        $region17: #{tpu_custom_call.1} parent=11 // pred_check
          %p219 = pneg %p152
        $region18: #{tpu_custom_call.1} parent=11 // pred_check_branch
          %221 = sbr.rel (%p219) target = $region20
        $region19: #{tpu_custom_call.1} parent=11 // pred_region
          _
        $region20: #{tpu_custom_call.1} parent=11 // pred_fallthru
          _
        // Predicated region
        $region21: #{tpu_custom_call.1} parent=11 // pred_check
          %p222 = pneg %p173
        $region22: #{tpu_custom_call.1} parent=11 // pred_check_branch
          %224 = sbr.rel (%p222) target = $region24
        $region23: #{tpu_custom_call.1} parent=11 // pred_region
          _
        $region24: #{tpu_custom_call.1} parent=11 // pred_fallthru
          _
      $region12: #{tpu_custom_call.1} parent=5 // pred_fallthru
        _
      %p225 = scmp.lt.s32.totalorder %s16, 2
      // Predicated region
      $region25: #{tpu_custom_call.1} parent=5 // pred_check
        %p226 = pneg %p225
      $region26: #{tpu_custom_call.1} parent=5 // pred_check_branch
        %228 = sbr.rel (%p226) target = $region28
      $region27: #{tpu_custom_call.1} parent=5 // pred_region
        // Predicated region
        $region29: #{tpu_custom_call.1} parent=27 // pred_check
          %p229 = pneg %p50
        $region30: #{tpu_custom_call.1} parent=27 // pred_check_branch
          %231 = sbr.rel (%p229) target = $region32
        $region31: #{tpu_custom_call.1} parent=27 // pred_region
          %s232 = smul.u32 2, %s24
          %p233 = scmp.lt.s32.totalorder %s23, 1
          %s234 = scalar_select %p233, %s23, 1
          %p235 = scmp.lt.s32.totalorder %s232, 1
          %s236 = scalar_select %p235, %s232, 1
          %s237 = smul.addr %s234, 2
          %s238 = sadd.s32 %s236, %s237
          %s239 = smul.addr %s238, 4
          %s240 = scalar_lea.vmem %s0, %s239
          %s241 = smul.u32 2, %s24
        $region32: #{tpu_custom_call.1} parent=27 // pred_fallthru
          _
        // Predicated region
        $region33: #{tpu_custom_call.1} parent=27 // pred_check
          %p242 = pneg %p78
        $region34: #{tpu_custom_call.1} parent=27 // pred_check_branch
          %244 = sbr.rel (%p242) target = $region36
        $region35: #{tpu_custom_call.1} parent=27 // pred_region
          %s245 = smul.u32 2, %s24
          %p246 = scmp.lt.s32.totalorder %s23, 1
          %s247 = scalar_select %p246, %s23, 1
          %p248 = scmp.lt.s32.totalorder %s245, 1
          %s249 = scalar_select %p248, %s245, 1
          %s250 = smul.addr %s247, 2
          %s251 = sadd.s32 %s249, %s250
          %s252 = smul.addr %s251, 4
          %s253 = scalar_lea.vmem %s1, %s252
          %s254 = smul.u32 2, %s24
        $region36: #{tpu_custom_call.1} parent=27 // pred_fallthru
          _
        // Predicated region
        $region37: #{tpu_custom_call.1} parent=27 // pred_check
          %p255 = pneg %p104
        $region38: #{tpu_custom_call.1} parent=27 // pred_check_branch
          %257 = sbr.rel (%p255) target = $region40
        $region39: #{tpu_custom_call.1} parent=27 // pred_region
          %p258 = scmp.lt.s32.totalorder %s23, 1
          %s259 = scalar_select %p258, %s23, 1
          %s260 = smul.addr %s259, 4
          %s261 = smul.addr %s260, 8
          %s262 = scalar_lea.vmem %s2, %s261
        $region40: #{tpu_custom_call.1} parent=27 // pred_fallthru
          _
      $region28: #{tpu_custom_call.1} parent=5 // pred_fallthru
        _
      %p263 = scmp.le.s32.totalorder 1, %s16
      %p264 = scmp.lt.s32.totalorder %s16, 3
      %p265 = pnand %p263, %p264
      %p266 = pneg %p265
      // Predicated region
      $region41: #{tpu_custom_call.1} parent=5 // pred_check
        _
      $region42: #{tpu_custom_call.1} parent=5 // pred_check_branch
        %268 = sbr.rel (%p265) target = $region44
      $region43: #{tpu_custom_call.1} parent=5 // pred_region
        %s269 = ssub.s32 %s16, 1
        %s270 = smul.u32 2, %s26
        %p271 = scmp.lt.s32.totalorder %s25, 1
        %s272 = scalar_select %p271, %s25, 1
        %p273 = scmp.lt.s32.totalorder %s270, 1
        %s274 = scalar_select %p273, %s270, 1
        %s275 = smul.addr %s272, 2
        %s276 = sadd.s32 %s274, %s275
        %s277 = smul.addr %s276, 4
        %s278 = scalar_lea.vmem %s0, %s277
        %p279 = pneg %p56
        %p280 = pneg %p53
        %s281 = smul.u32 2, %s26
        %p282 = scmp.lt.s32.totalorder %s25, 1
        %s283 = scalar_select %p282, %s25, 1
        %p284 = scmp.lt.s32.totalorder %s281, 1
        %s285 = scalar_select %p284, %s281, 1
        %s286 = smul.addr %s283, 2
        %s287 = sadd.s32 %s285, %s286
        %s288 = smul.addr %s287, 4
        %s289 = scalar_lea.vmem %s1, %s288
        %p290 = pneg %p84
        %p291 = pneg %p81
        %p292 = scmp.lt.s32.totalorder %s25, 1
        %s293 = scalar_select %p292, %s25, 1
        %s294 = smul.addr %s293, 4
        %s295 = smul.addr %s294, 8
        %s296 = scalar_lea.vmem %s2, %s295
        %p297 = pneg %p110
        %p298 = pneg %p107
        %p299 = pneg %p131
        %p300 = pneg %p128
        %p301 = pneg %p152
        %p302 = pneg %p149
        %p303 = pneg %p173
        %p304 = pneg %p170
        %p305 = pneg %p201
        %p306 = pneg %p198
        %s307 = sand.u32 %s188, 1
        %s308 = scalar_lea.sflag [#allocation4], %s307
        %s309 = sand.u32 %s188, 1
        %s310 = smul.addr %s309, 8
        %s311 = scalar_lea.vmem [#allocation3], %s310
        %s312 = smul.u32 2, %s26
        %p313 = scmp.lt.s32.totalorder %s25, 1
        %s314 = scalar_select %p313, %s25, 1
        %p315 = scmp.lt.s32.totalorder %s312, 1
        %s316 = scalar_select %p315, %s312, 1
        %s317 = smul.addr %s314, 2
        %s318 = sadd.s32 %s316, %s317
        %s319 = smul.addr %s318, 4
        %s320 = scalar_lea.vmem %s0, %s319
        %s321 = smul.u32 2, %s26
        %s322 = smul.u32 2, %s26
        %p323 = scmp.lt.s32.totalorder %s25, 1
        %s324 = scalar_select %p323, %s25, 1
        %p325 = scmp.lt.s32.totalorder %s322, 1
        %s326 = scalar_select %p325, %s322, 1
        %s327 = smul.addr %s324, 2
        %s328 = sadd.s32 %s326, %s327
        %s329 = smul.addr %s328, 4
        %s330 = scalar_lea.vmem %s1, %s329
        %s331 = smul.u32 2, %s26
        %p332 = scmp.lt.s32.totalorder %s25, 1
        %s333 = scalar_select %p332, %s25, 1
        %s334 = smul.addr %s333, 4
        %s335 = smul.addr %s334, 8
        %s336 = scalar_lea.vmem %s2, %s335
        %s337 = smul.u32 2, %s26
        %v338 = vld [vmem:[%s320] sm:$0xff]
        %v339 = vld [vmem:[%s330] sm:$0xff]
        %v341 = vcombine.high %v338, %v338
        %v344 = vcombine.low %v339, %v339
        %vm346 = vcmask 1043456
        %v347 = vsel %vm346, %v338, %v344
        %v348 = vsel %vm346, %v341, %v339
        %v349 = vld [vmem:[%s3] sm:$0xff]
        %v350 = vld [vmem:[%s3 + $0x8] sm:$0xff]
        %v351 = vld [vmem:[%s3 + $0x10] sm:$0xff]
        %v352 = vld [vmem:[%s3 + $0x18] sm:$0xff]
        %v353 = vld [vmem:[%s336] sm:$0xff]
        %v354 = vld [vmem:[%s336 + $0x8] sm:$0xff]
        %v355 = vld [vmem:[%s336 + $0x10] sm:$0xff]
        %v356 = vld [vmem:[%s336 + $0x18] sm:$0xff]
        %358 = vset.pattern.permute.xlu0 0
        %359 = vperm.xlu0 %358, %v353
        %v360 = vpop.permute.xlu0 %359
        %363 = vset.pattern.permute.xlu0 0
        %364 = vperm.xlu0 %363, %v354
        %v365 = vpop.permute.xlu0 %364
        %368 = vset.pattern.permute.xlu0 0
        %369 = vperm.xlu0 %368, %v355
        %v370 = vpop.permute.xlu0 %369
        %373 = vset.pattern.permute.xlu0 0
        %374 = vperm.xlu0 %373, %v356
        %v375 = vpop.permute.xlu0 %374
        %vm377 = vcmask 64512
        %v379 = vsel %vm377, %v349, 0
        %v382 = vsel %vm377, %v350, 0
        %v385 = vsel %vm377, %v351, 0
        %v388 = vsel %vm377, %v352, 0
        %390 = vmatprep.subr.mxu0 %v348
        %391 = vmatpush1.msra.mxu0 %v347
        %392 = vmatprep.subr.mxu0 0.0
        %393 = vmatpush1.msra.mxu0 0.0
        %394 = vmatprep.subr.mxu0 0.0
        %395 = vmatpush1.msra.mxu0 0.0
        %396 = vmatprep.subr.mxu0 0.0
        %397 = vmatpush1.msra.mxu0 0.0
        %398 = vmatprep.subr.mxu0 0.0
        %399 = vmatpush1.msra.mxu0 0.0
        %400 = vmatprep.subr.mxu0 0.0
        %401 = vmatpush1.msra.mxu0 0.0
        %402 = vmatprep.subr.mxu0 0.0
        %403 = vmatpush1.msra.mxu0 0.0
        %404 = vmatprep.subr.mxu0 0.0
        %405 = vmatpush1.msra.mxu0 0.0
        %406 = vmatprep.subr.mxu0 0.0
        %407 = vmatpush1.msra.mxu0 0.0
        %408 = vmatprep.subr.mxu0 0.0
        %409 = vmatpush1.msra.mxu0 0.0
        %410 = vmatprep.subr.mxu0 0.0
        %411 = vmatpush1.msra.mxu0 0.0
        %412 = vmatprep.subr.mxu0 0.0
        %413 = vmatpush1.msra.mxu0 0.0
        %414 = vmatprep.subr.mxu0 0.0
        %415 = vmatpush1.msra.mxu0 0.0
        %416 = vmatprep.subr.mxu0 0.0
        %417 = vmatpush1.msra.mxu0 0.0
        %418 = vmatprep.subr.mxu0 0.0
        %419 = vmatpush1.msra.mxu0 0.0
        %420 = vmatprep.subr.mxu0 0.0
        %421 = vmatpush1.msra.mxu0 0.0
        %422 = vmatprep.subr.mxu0 0.0
        %423 = vmatpush1.msra.mxu0 0.0
        %424 = vmatprep.subr.mxu0 0.0
        %425 = vmatpush1.msra.mxu0 0.0
        %426 = vmatprep.subr.mxu0 0.0
        %427 = vmatpush1.msra.mxu0 0.0
        %428 = vmatprep.subr.mxu0 0.0
        %429 = vmatpush1.msra.mxu0 0.0
        %430 = vmatprep.subr.mxu0 0.0
        %431 = vmatpush1.msra.mxu0 0.0
        %432 = vmatprep.subr.mxu0 0.0
        %433 = vmatpush1.msra.mxu0 0.0
        %434 = vmatprep.subr.mxu0 0.0
        %435 = vmatpush1.msra.mxu0 0.0
        %436 = vmatprep.subr.mxu0 0.0
        %437 = vmatpush1.msra.mxu0 0.0
        %438 = vmatprep.subr.mxu0 0.0
        %439 = vmatpush1.msra.mxu0 0.0
        %440 = vmatprep.subr.mxu0 0.0
        %441 = vmatpush1.msra.mxu0 0.0
        %442 = vmatprep.subr.mxu0 0.0
        %443 = vmatpush1.msra.mxu0 0.0
        %444 = vmatprep.subr.mxu0 0.0
        %445 = vmatpush1.msra.mxu0 0.0
        %446 = vmatprep.subr.mxu0 0.0
        %447 = vmatpush1.msra.mxu0 0.0
        %448 = vmatprep.subr.mxu0 0.0
        %449 = vmatpush1.msra.mxu0 0.0
        %450 = vmatprep.subr.mxu0 0.0
        %451 = vmatpush1.msra.mxu0 0.0
        %452 = vmatprep.subr.mxu0 0.0
        %453 = vmatpush1.msra.mxu0 0.0
        %454 = vmatprep.mubr.f32.mxu0 0.0
        %455 = vmatmul.mubr.f32.gmra.mrb[0].mxu0 %v379
        %v456 = vpop.f32.mrb[0].mxu0
        %v457 = vadd.f32 %v360, %v456
        %v458 = vpop.f32.mrb[0].mxu0
        %v459 = vadd.f32 %v360, %v458
        %460 = vmatprep.mubr.f32.mxu0 0.0
        %461 = vmatmul.mubr.f32.gmra.mrb[0].mxu0 %v382
        %v462 = vpop.f32.mrb[0].mxu0
        %v463 = vadd.f32 %v365, %v462
        %v464 = vpop.f32.mrb[0].mxu0
        %v465 = vadd.f32 %v365, %v464
        %466 = vmatprep.mubr.f32.mxu0 0.0
        %467 = vmatmul.mubr.f32.gmra.mrb[0].mxu0 %v385
        %v468 = vpop.f32.mrb[0].mxu0
        %v469 = vadd.f32 %v370, %v468
        %v470 = vpop.f32.mrb[0].mxu0
        %v471 = vadd.f32 %v370, %v470
        %472 = vmatprep.mubr.f32.mxu0 0.0
        %473 = vmatmul.mubr.f32.gmra.mrb[0].mxu0 %v388
        %v474 = vpop.f32.mrb[0].mxu0
        %v475 = vadd.f32 %v375, %v474
        %v476 = vpop.f32.mrb[0].mxu0
        %v477 = vadd.f32 %v375, %v476
        %478 = vdwg.mxu0
        %v479 = vmax.f32 %v457, 0.0
        %v480 = vmax.f32 %v459, 0.0
        %v481 = vmax.f32 %v463, 0.0
        %v482 = vmax.f32 %v465, 0.0
        %v483 = vmax.f32 %v469, 0.0
        %v484 = vmax.f32 %v471, 0.0
        %v485 = vmax.f32 %v475, 0.0
        %v486 = vmax.f32 %v477, 0.0
        %v487 = vld [vmem:[%s4] sm:$0xff]
        %v488 = vld [vmem:[%s4 + $0x8] sm:$0xff]
        %v489 = vld [vmem:[%s4 + $0x10] sm:$0xff]
        %v490 = vld [vmem:[%s4 + $0x18] sm:$0xff]
        %492 = vset.pattern.permute.xlu0 0
        %493 = vperm.xlu0 %492, %v487
        %v494 = vpop.permute.xlu0 %493
        %497 = vset.pattern.permute.xlu0 0
        %498 = vperm.xlu0 %497, %v488
        %v499 = vpop.permute.xlu0 %498
        %502 = vset.pattern.permute.xlu0 0
        %503 = vperm.xlu0 %502, %v489
        %v504 = vpop.permute.xlu0 %503
        %507 = vset.pattern.permute.xlu0 0
        %508 = vperm.xlu0 %507, %v490
        %v509 = vpop.permute.xlu0 %508
        %v511 = vmul.f32 %v479, %v494
        %v512 = vmul.f32 %v480, %v494
        %v513 = vmul.f32 %v481, %v499
        %v514 = vmul.f32 %v482, %v499
        %v515 = vmul.f32 %v483, %v504
        %v516 = vmul.f32 %v484, %v504
        %v517 = vmul.f32 %v485, %v509
        %v518 = vmul.f32 %v486, %v509
        %v519 = vadd.f32 %v511, %v513
        %v520 = vadd.f32 %v519, %v515
        %v521 = vadd.f32 %v520, %v517
        %v522 = vrot.slane %v521, 4
        %v523 = vadd.f32 %v521, %v522
        %v524 = vrot.slane %v523, 2
        %v525 = vadd.f32 %v523, %v524
        %v526 = vrot.slane %v525, 1
        %v527 = vadd.f32 %v525, %v526
        %v528 = vadd.f32 %v512, %v514
        %v529 = vadd.f32 %v528, %v516
        %v530 = vadd.f32 %v529, %v518
        %v531 = vrot.slane %v530, 4
        %v532 = vadd.f32 %v530, %v531
        %v533 = vrot.slane %v532, 2
        %v534 = vadd.f32 %v532, %v533
        %v535 = vrot.slane %v534, 1
        %v536 = vadd.f32 %v534, %v535
        %s537 = sld [smem:[#allocation2]]
        %v538 = vstv %s537
        %v539 = vadd.f32 %v527, %v538
        %v540 = vadd.f32 %v536, %v538
        %v541 = vxor.u32 %v539, 2147483648
        %v542 = vxor.u32 %v540, 2147483648
        %v543 = vmul.f32 %v541, 1.442695
        %v544 = vpow.pop %v543
        %v545 = vmul.f32 %v542, 1.442695
        %v546 = vpow.pop %v545
        %v547 = vadd.f32 %v544, 1.0
        %v548 = vadd.f32 %v546, 1.0
        %v549 = vrcp.pop %v547
        %v550 = vmul.f32 1.0, %v549
        %v551 = vrcp.pop %v548
        %v552 = vmul.f32 1.0, %v551
        %v553 = vsub.f32 %v338, %v339
        %v555 = vcombine.high %v553, %v553
        %v557 = vmul.f32 %v550, %v553
        %v558 = vmul.f32 %v552, %v555
        %v561 = vcombine.low %v557, %v558
        %v563 = vadd.f32 %v339, %v561
        %564 = vst [vmem:[%s311] sm:$0xff] %v563
        %s565 = sand.u32 %s188, 1
        %s566 = scalar_lea.sflag [#allocation4], %s565
        %s567 = sand.u32 %s188, 1
        %s568 = smul.addr %s567, 8
        %s569 = scalar_lea.vmem [#allocation3], %s568
        // Predicated region
        $region45: #{tpu_custom_call.1} parent=43 // pred_check
          %p570 = pneg %p198
        $region46: #{tpu_custom_call.1} parent=43 // pred_check_branch
          %572 = sbr.rel (%p570) target = $region48
        $region47: #{tpu_custom_call.1} parent=43 // pred_region
          %s573 = smul.u32 2, %s26
          %s575 = ssub.s32 128, 128
          %576 = vsyncadd %s566, %s575
          %s577 = smul.addr %s25, 2
          %s578 = sadd.s32 %s573, %s577
          %s579 = smul.addr %s578, 64
          %s580 = scalar_lea.hbm %s6, %s579
          %s582 = sshll.u32 %s569, 4
          %s583 = int_to_ptr.vmem [resolvable:$true] %s582
          %585 = dma.vmem_to_hbm [thread:$0]  %s583, 128, %s580, %s566
        $region48: #{tpu_custom_call.1} parent=43 // pred_fallthru
          _
      $region44: #{tpu_custom_call.1} parent=5 // pred_fallthru
        _
      %p586 = scmp.le.s32.totalorder 2, %s16
      // Predicated region
      $region49: #{tpu_custom_call.1} parent=5 // pred_check
        %p587 = pneg %p586
      $region50: #{tpu_custom_call.1} parent=5 // pred_check_branch
        %589 = sbr.rel (%p587) target = $region52
      $region51: #{tpu_custom_call.1} parent=5 // pred_region
        %s590 = ssub.s32 %s16, 2
        // Predicated region
        $region53: #{tpu_custom_call.1} parent=51 // pred_check
          %p591 = pneg %p204
        $region54: #{tpu_custom_call.1} parent=51 // pred_check_branch
          %593 = sbr.rel (%p591) target = $region56
        $region55: #{tpu_custom_call.1} parent=51 // pred_region
          %s594 = sand.u32 %s189, 1
          %s595 = scalar_lea.sflag [#allocation4], %s594
          %s596 = sand.u32 %s189, 1
          %s597 = smul.addr %s596, 8
          %s598 = scalar_lea.vmem [#allocation3], %s597
          %599 = dma.done %s595, 128
        $region56: #{tpu_custom_call.1} parent=51 // pred_fallthru
          _
      $region52: #{tpu_custom_call.1} parent=5 // pred_fallthru
        _
    $region6: #{tpu_custom_call.1} parent=1 // loop_footer
      %s20 = sadd.s32 1, %s16
    $region7: #{tpu_custom_call.1} parent=1 // loop_footer_branch
      %15 = sbr.rel target = $region3
    $region8: #{tpu_custom_call.1} parent=1 // loop_exit
      _
    %600 = vsyncpa [#allocation4], 1
    %s601 = scalar_lea.sflag [#allocation4], 1
    %602 = vsyncpa %s601, 1

</llo_original>
